<compile_context>
chip_gen: v7x
topology: tpu7x:2x2x1
jax: 0.10.0
libtpu: 0.0.40
codegen_flags: <defaults>
</compile_context>

<pallas_src>
import functools

import numpy as np

import jax
import jax.numpy as jnp
from jax.experimental import pallas as pl
from jax.experimental.pallas import tpu as pltpu


def _fused_conv_bn_relu_kernel(p_ref, t_ref, prm_ref, grp_ref, o_ref, *, inv_p, eps):
    """Single-step fused conv + BN(batch stats) + ReLU.

    p_ref   : (M, K2)   3x3-window patches, depth folded into K2 = Cin*D*kh*kw
    t_ref   : (K2, CL)  Toeplitz conv weights; lanes = (cout, do), zero-padded to CL
    prm_ref : (8, CL)   packed per-lane params: row0 bias, row1 gamma, row2 beta
    grp_ref : (CL, CL)  0/1 matrix, 1 where two lanes belong to the same output channel
    o_ref   : (M, CL)   fused output, lanes = (cout, do)
    """
    # Conv as one MXU matmul + bias.
    y = jnp.dot(p_ref[...], t_ref[...], preferred_element_type=jnp.float32)
    y = y + prm_ref[0:1, :]

    # Single-pass BN statistics: per-lane sums over rows (sublane reduce), then per-channel
    # group sums -- already broadcast back to every lane of the channel -- via one constant
    # matmul (no cross-lane relayouts).
    row_sum = jnp.sum(y, axis=0, keepdims=True)                                  # (1, CL)
    row_ssq = jnp.sum(y * y, axis=0, keepdims=True)                              # (1, CL)
    mean = jnp.dot(row_sum, grp_ref[...], preferred_element_type=jnp.float32) * inv_p
    ey2 = jnp.dot(row_ssq, grp_ref[...], preferred_element_type=jnp.float32) * inv_p
    var = ey2 - mean * mean                       # biased variance (PyTorch training BN)
    inv_std = jax.lax.rsqrt(var + eps)

    scale = prm_ref[1:2, :] * inv_std             # gamma / std
    shift = prm_ref[2:3, :] - mean * scale        # beta - mean * gamma / std
    # Padded lanes: weights/gamma/beta are 0 and mean/var are 0 -> scale=shift=0 -> output 0
    # (sliced off in the wrapper).  Keep that invariant if the padding scheme changes.
    o_ref[...] = jnp.maximum(y * scale + shift, 0.0)


@functools.partial(jax.jit, static_argnames=("eps",))
def conv_bn_relu_3d(x, w, b, gamma, beta, eps=1e-5):
    """x: (N, Cin, D, H, W); w: (Cout, Cin, kd, kh, kw) -> (N, Cout, Do, Ho, Wo)."""
    N, Cin, D, H, W = x.shape
    Cout, Cin_w, kd, kh, kw = w.shape
    assert Cin == Cin_w
    Do, Ho, Wo = D - kd + 1, H - kh + 1, W - kw + 1   # stride=1, padding=0

    M = N * Ho * Wo                    # matmul rows: (n, ho, wo)
    K2 = Cin * D * kh * kw             # contraction: (cin, d, kh, kw)
    NC = Cout * Do                     # matmul cols: (cout, do)
    CL = ((NC + 127) // 128) * 128     # lane-dense padded column count
    P = N * Do * Ho * Wo               # BN population per channel
    f32 = jnp.float32

    # ---- glue (inside this jit): 3x3-window patches with depth folded into "channels" ----
    x4 = x.reshape(N, Cin * D, H, W).astype(f32)
    patches = jax.lax.conv_general_dilated_patches(
        x4, filter_shape=(kh, kw), window_strides=(1, 1), padding="VALID",
        dimension_numbers=("NCHW", "OIHW", "NHWC"))            # (N, Ho, Wo, K2)
    patches = patches.reshape(M, K2)   # feature index = (cin*D + d)*(kh*kw) + kh_i*kw + kw_i

    # ---- Toeplitz weights: fold the kd-tap depth conv into the contraction over d ----
    # T[(cin, d, khi, kwi), (c, do)] = w[c, cin, d - do, khi, kwi] if 0 <= d - do < kd else 0
    d_idx = np.arange(D)[:, None] - np.arange(Do)[None, :]                 # (D, Do)
    valid = ((d_idx >= 0) & (d_idx < kd)).astype(np.float32)               # (D, Do)
    d_clip = np.clip(d_idx, 0, kd - 1)                                     # (D, Do)
    w_t = jnp.transpose(w.astype(f32), (2, 1, 3, 4, 0))                    # (kd, Cin, kh, kw, Cout)
    t6 = w_t[d_clip] * valid[:, :, None, None, None, None]                 # (D, Do, Cin, kh, kw, Cout)
    t = jnp.transpose(t6, (2, 0, 3, 4, 5, 1)).reshape(K2, NC)              # rows (cin,d,kh,kw), cols (c,do)
    t = jnp.zeros((K2, CL), f32).at[:, :NC].set(t)

    # ---- packed per-lane BN params (single operand): row0 bias, row1 gamma, row2 beta ----
    prm = jnp.zeros((8, CL), f32)
    prm = prm.at[0, :NC].set(jnp.repeat(b.astype(f32), Do))
    prm = prm.at[1, :NC].set(jnp.repeat(gamma.astype(f32), Do))
    prm = prm.at[2, :NC].set(jnp.repeat(beta.astype(f32), Do))

    # ---- constant 0/1 channel-grouping matrix (host numpy -> baked constant) ----
    lane_c = np.arange(CL) // Do
    lane_ok = np.arange(CL) < NC
    grp = ((lane_c[:, None] == lane_c[None, :])
           & lane_ok[:, None] & lane_ok[None, :]).astype(np.float32)
    grp = jnp.asarray(grp)

    kern = functools.partial(_fused_conv_bn_relu_kernel, inv_p=1.0 / P, eps=eps)

    cost = pl.CostEstimate(
        flops=2 * M * K2 * CL + 4 * CL * CL + 10 * M * CL,
        transcendentals=CL,
        bytes_accessed=4 * (M * K2 + K2 * CL + 8 * CL + CL * CL + M * CL))

    out = pl.pallas_call(
        kern,
        out_shape=jax.ShapeDtypeStruct((M, CL), f32),
        grid_spec=pltpu.PrefetchScalarGridSpec(
            num_scalar_prefetch=0,
            grid=(1,),
            in_specs=[
                pl.BlockSpec((M, K2), lambda i: (0, 0)),    # patches (full block, ~276 KiB)
                pl.BlockSpec((K2, CL), lambda i: (0, 0)),   # Toeplitz weights
                pl.BlockSpec((8, CL), lambda i: (0, 0)),    # packed bias/gamma/beta
                pl.BlockSpec((CL, CL), lambda i: (0, 0)),   # channel-grouping matrix
            ],
            out_specs=pl.BlockSpec((M, CL), lambda i: (0, 0)),
        ),
        compiler_params=pltpu.CompilerParams(
            # Single sequential step; at this size one TensorCore is intentional
            # (a v7x dual-core split would need a cross-core stat reduction).
            dimension_semantics=("arbitrary",)),
        cost_estimate=cost,
    )(patches, t, prm, grp)

    # ---- glue: drop lane padding, back to NCDHW ----
    out = out[:, :NC].reshape(N, Ho, Wo, Cout, Do)
    # TODO(synk): BatchNorm3d running_mean/running_var buffer updates (training-time side
    # effect only, not part of the returned tensor) are not tracked here.
    return jnp.transpose(out, (0, 3, 4, 1, 2))               # (N, Cout, Do, Ho, Wo)


# ---------------- pure-JAX reference (for correctness check) ----------------
def reference(x, w, b, gamma, beta, eps=1e-5):
    y = jax.lax.conv_general_dilated(
        x, w, window_strides=(1, 1, 1), padding="VALID",
        dimension_numbers=("NCDHW", "OIDHW", "NCDHW"))
    y = y + b.reshape(1, -1, 1, 1, 1)
    mean = jnp.mean(y, axis=(0, 2, 3, 4), keepdims=True)
    var = jnp.mean((y - mean) ** 2, axis=(0, 2, 3, 4), keepdims=True)
    yn = (y - mean) * jax.lax.rsqrt(var + eps)
    yn = yn * gamma.reshape(1, -1, 1, 1, 1) + beta.reshape(1, -1, 1, 1, 1)
    return jnp.maximum(yn, 0.0)


if __name__ == "__main__":
    key = jax.random.PRNGKey(0)
    k1, k2, k3, k4, k5 = jax.random.split(key, 5)

    # Module defaults: in_channels=1, out_channels=24, kernel_size=(51, 3, 3), padding=0, stride=1
    N, Cin, D, H, W = 2, 1, 60, 10, 10
    Cout, kd, kh, kw = 24, 51, 3, 3

    x = jax.random.normal(k1, (N, Cin, D, H, W), dtype=jnp.float32)
    w = 0.05 * jax.random.normal(k2, (Cout, Cin, kd, kh, kw), dtype=jnp.float32)
    b = 0.10 * jax.random.normal(k3, (Cout,), dtype=jnp.float32)
    gamma = 1.0 + 0.1 * jax.random.normal(k4, (Cout,), dtype=jnp.float32)
    beta = 0.1 * jax.random.normal(k5, (Cout,), dtype=jnp.float32)

    out = jax.block_until_ready(conv_bn_relu_3d(x, w, b, gamma, beta))

    ref = jax.block_until_ready(reference(x, w, b, gamma, beta))
    assert out.shape == ref.shape == (N, Cout, D - kd + 1, H - kh + 1, W - kw + 1)
    max_err = float(jnp.max(jnp.abs(out - ref)))
    if not jnp.allclose(out, ref, atol=1e-3, rtol=1e-2):
        raise AssertionError(f"mismatch vs reference: max abs diff = {max_err}")

    print("KERNEL_OK")
</pallas_src>

<mosaic_0001>
module attributes {stable_mosaic.version = 11 : i64} {
  func.func @_fused_conv_bn_relu_kernel(%arg0: i32, %arg1: memref<128x540xf32, #tpu.memory_space<vmem>>, %arg2: memref<540x256xf32, #tpu.memory_space<vmem>>, %arg3: memref<8x256xf32, #tpu.memory_space<vmem>>, %arg4: memref<256x256xf32, #tpu.memory_space<vmem>>, %arg5: memref<128x256xf32, #tpu.memory_space<vmem>>) attributes {dimension_semantics = [#tpu.dimension_semantics<arbitrary>], iteration_bounds = array<i64: 1>, scalar_prefetch = 0 : i64, scratch_operands = 0 : i64, tpu.core_type = #tpu.core_type<tc>, window_params = [{pipeline_mode = #tpu.pipeline_mode<synchronous>, transform_indices = @transform_0, window_bounds = array<i64: 128, 540>}, {pipeline_mode = #tpu.pipeline_mode<synchronous>, transform_indices = @transform_1, window_bounds = array<i64: 540, 256>}, {pipeline_mode = #tpu.pipeline_mode<synchronous>, transform_indices = @transform_2, window_bounds = array<i64: 8, 256>}, {pipeline_mode = #tpu.pipeline_mode<synchronous>, transform_indices = @transform_3, window_bounds = array<i64: 256, 256>}, {pipeline_mode = #tpu.pipeline_mode<synchronous>, transform_indices = @transform_4, window_bounds = array<i64: 128, 256>}]} {
    %c0 = arith.constant 0 : index
    %c0_0 = arith.constant 0 : index
    %0 = vector.load %arg1[%c0, %c0_0] : memref<128x540xf32, #tpu.memory_space<vmem>>, vector<128x540xf32>
    %c0_1 = arith.constant 0 : index
    %c0_2 = arith.constant 0 : index
    %1 = vector.load %arg2[%c0_1, %c0_2] : memref<540x256xf32, #tpu.memory_space<vmem>>, vector<540x256xf32>
    %cst = arith.constant dense<0.000000e+00> : vector<128x256xf32>
    %2 = tpu.matmul %0, %1, %cst {dimension_numbers = #tpu.dot_dimension_numbers<[1], [0], [0], [1], [0, 0, 1, 1], [], []>} : vector<128x540xf32>, vector<540x256xf32>, vector<128x256xf32> -> vector<128x256xf32>
    %c0_3 = arith.constant 0 : index
    %c0_4 = arith.constant 0 : index
    %3 = vector.load %arg3[%c0_3, %c0_4] : memref<8x256xf32, #tpu.memory_space<vmem>>, vector<1x256xf32>
    %4 = vector.broadcast %3 : vector<1x256xf32> to vector<128x256xf32>
    %5 = arith.addf %2, %4 : vector<128x256xf32>
    %cst_5 = arith.constant dense<0.000000e+00> : vector<256xf32>
    %6 = vector.multi_reduction <add>, %5, %cst_5 [0] : vector<128x256xf32> to vector<256xf32>
    %7 = vector.shape_cast %6 : vector<256xf32> to vector<1x256xf32>
    %8 = arith.mulf %5, %5 : vector<128x256xf32>
    %cst_6 = arith.constant dense<0.000000e+00> : vector<256xf32>
    %9 = vector.multi_reduction <add>, %8, %cst_6 [0] : vector<128x256xf32> to vector<256xf32>
    %10 = vector.shape_cast %9 : vector<256xf32> to vector<1x256xf32>
    %c0_7 = arith.constant 0 : index
    %c0_8 = arith.constant 0 : index
    %11 = vector.load %arg4[%c0_7, %c0_8] : memref<256x256xf32, #tpu.memory_space<vmem>>, vector<256x256xf32>
    %cst_9 = arith.constant dense<0.000000e+00> : vector<1x256xf32>
    %12 = tpu.matmul %7, %11, %cst_9 {dimension_numbers = #tpu.dot_dimension_numbers<[1], [0], [0], [1], [0, 0, 1, 1], [], []>} : vector<1x256xf32>, vector<256x256xf32>, vector<1x256xf32> -> vector<1x256xf32>
    %cst_10 = arith.constant 7.812500e-04 : f32
    %13 = vector.broadcast %cst_10 : f32 to vector<1x256xf32>
    %14 = arith.mulf %12, %13 : vector<1x256xf32>
    %c0_11 = arith.constant 0 : index
    %c0_12 = arith.constant 0 : index
    %15 = vector.load %arg4[%c0_11, %c0_12] : memref<256x256xf32, #tpu.memory_space<vmem>>, vector<256x256xf32>
    %cst_13 = arith.constant dense<0.000000e+00> : vector<1x256xf32>
    %16 = tpu.matmul %10, %15, %cst_13 {dimension_numbers = #tpu.dot_dimension_numbers<[1], [0], [0], [1], [0, 0, 1, 1], [], []>} : vector<1x256xf32>, vector<256x256xf32>, vector<1x256xf32> -> vector<1x256xf32>
    %cst_14 = arith.constant 7.812500e-04 : f32
    %17 = vector.broadcast %cst_14 : f32 to vector<1x256xf32>
    %18 = arith.mulf %16, %17 : vector<1x256xf32>
    %19 = arith.mulf %14, %14 : vector<1x256xf32>
    %20 = arith.subf %18, %19 : vector<1x256xf32>
    %cst_15 = arith.constant 9.99999974E-6 : f32
    %21 = vector.broadcast %cst_15 : f32 to vector<1x256xf32>
    %22 = arith.addf %20, %21 : vector<1x256xf32>
    %23 = math.rsqrt %22 : vector<1x256xf32>
    %c1 = arith.constant 1 : index
    %c0_16 = arith.constant 0 : index
    %24 = vector.load %arg3[%c1, %c0_16] : memref<8x256xf32, #tpu.memory_space<vmem>>, vector<1x256xf32>
    %25 = arith.mulf %24, %23 : vector<1x256xf32>
    %c2 = arith.constant 2 : index
    %c0_17 = arith.constant 0 : index
    %26 = vector.load %arg3[%c2, %c0_17] : memref<8x256xf32, #tpu.memory_space<vmem>>, vector<1x256xf32>
    %27 = arith.mulf %14, %25 : vector<1x256xf32>
    %28 = arith.subf %26, %27 : vector<1x256xf32>
    %29 = vector.broadcast %25 : vector<1x256xf32> to vector<128x256xf32>
    %30 = arith.mulf %5, %29 : vector<128x256xf32>
    %31 = vector.broadcast %28 : vector<1x256xf32> to vector<128x256xf32>
    %32 = arith.addf %30, %31 : vector<128x256xf32>
    %cst_18 = arith.constant 0.000000e+00 : f32
    %33 = vector.broadcast %cst_18 : f32 to vector<128x256xf32>
    %34 = arith.maximumf %32, %33 : vector<128x256xf32>
    %c0_19 = arith.constant 0 : index
    %c0_20 = arith.constant 0 : index
    %35 = vector.load %arg5[%c0_19, %c0_20] : memref<128x256xf32, #tpu.memory_space<vmem>>, vector<128x256xf32>
    tpu.vector_store %arg5[%c0_19, %c0_20], %34 {strides = array<i32>} : memref<128x256xf32, #tpu.memory_space<vmem>>, vector<128x256xf32>,
    return
  }
  func.func @transform_0(%arg0: i32) -> (i32, i32) {
    %c0_i32 = arith.constant 0 : i32
    %c0_i32_0 = arith.constant 0 : i32
    %c0_i32_1 = arith.constant 0 : i32
    return %c0_i32, %c0_i32_0 : i32, i32
  }
  func.func @transform_1(%arg0: i32) -> (i32, i32) {
    %c0_i32 = arith.constant 0 : i32
    %c0_i32_0 = arith.constant 0 : i32
    %c0_i32_1 = arith.constant 0 : i32
    return %c0_i32, %c0_i32_0 : i32, i32
  }
  func.func @transform_2(%arg0: i32) -> (i32, i32) {
    %c0_i32 = arith.constant 0 : i32
    %c0_i32_0 = arith.constant 0 : i32
    %c0_i32_1 = arith.constant 0 : i32
    return %c0_i32, %c0_i32_0 : i32, i32
  }
  func.func @transform_3(%arg0: i32) -> (i32, i32) {
    %c0_i32 = arith.constant 0 : i32
    %c0_i32_0 = arith.constant 0 : i32
    %c0_i32_1 = arith.constant 0 : i32
    return %c0_i32, %c0_i32_0 : i32, i32
  }
  func.func @transform_4(%arg0: i32) -> (i32, i32) {
    %c0_i32 = arith.constant 0 : i32
    %c0_i32_0 = arith.constant 0 : i32
    %c0_i32_1 = arith.constant 0 : i32
    return %c0_i32, %c0_i32_0 : i32, i32
  }
}

</mosaic_0001>

<llo_original>
// kernel: conv_bn_relu_3d.1
$region0: #{conv_bn_relu_3d.1}
  #allocation0 [shape = 'u32[]', space=smem, size = 0x4, offset = 0x4, fixed_abs, tag = 'smem constant byte address 0x4 - core index']
  #allocation1 [shape = 'u32[144,128]{1,0:T(1,128)}', space=vmem, size = 0x12000, scoped, tag = 'internal scratch']
  %s0 = inlined_call_operand.vmem [shape: f32[128,540], index: 0, kind: input, shape index: {}]
  %s1 = inlined_call_operand.vmem [shape: f32[540,256], index: 1, kind: input, shape index: {}]
  %s2 = inlined_call_operand.vmem [shape: f32[8,256], index: 2, kind: input, shape index: {}]
  %s3 = inlined_call_operand.vmem [shape: f32[256,256], index: 3, kind: input, shape index: {}]
  %s4 = inlined_call_operand.vmem [shape: f32[128,256], index: 4, kind: output, shape index: {}]
  %s5 = sld [smem:[#allocation0]]
  $region26: #{conv_bn_relu_3d.1} parent=0
    _
  %s7 = ssub.s32 1, %s5
  %s8 = scalar_select 0, %s7, %s5
  // Predicated region
  $region2: #{conv_bn_relu_3d.1} parent=0 // pred_check
    _
  $region3: #{conv_bn_relu_3d.1} parent=0 // pred_check_branch
    %10 = sbr.rel (0) target = $region5
  $region4: #{conv_bn_relu_3d.1} parent=0 // pred_region
    _
  $region5: #{conv_bn_relu_3d.1} parent=0 // pred_fallthru
    _
  // Predicated region
  $region6: #{conv_bn_relu_3d.1} parent=0 // pred_check
    _
  $region7: #{conv_bn_relu_3d.1} parent=0 // pred_check_branch
    %12 = sbr.rel (0) target = $region9
  $region8: #{conv_bn_relu_3d.1} parent=0 // pred_region
    _
  $region9: #{conv_bn_relu_3d.1} parent=0 // pred_fallthru
    _
  // Predicated region
  $region10: #{conv_bn_relu_3d.1} parent=0 // pred_check
    _
  $region11: #{conv_bn_relu_3d.1} parent=0 // pred_check_branch
    %14 = sbr.rel (0) target = $region13
  $region12: #{conv_bn_relu_3d.1} parent=0 // pred_region
    _
  $region13: #{conv_bn_relu_3d.1} parent=0 // pred_fallthru
    _
  // Predicated region
  $region14: #{conv_bn_relu_3d.1} parent=0 // pred_check
    _
  $region15: #{conv_bn_relu_3d.1} parent=0 // pred_check_branch
    %16 = sbr.rel (0) target = $region17
  $region16: #{conv_bn_relu_3d.1} parent=0 // pred_region
    _
  $region17: #{conv_bn_relu_3d.1} parent=0 // pred_fallthru
    _
  %v17 = vld [vmem:[%s0] sm:$0xff]
  %v18 = vld [vmem:[%s0 + $0x8] sm:$0xff]
  %v19 = vld [vmem:[%s0 + $0x10] sm:$0xff]
  %v20 = vld [vmem:[%s0 + $0x18] sm:$0xff]
  %v21 = vld [vmem:[%s0 + $0x20] sm:$0xff]
  %v22 = vld [vmem:[%s0 + $0x28] sm:$0xff]
  %v23 = vld [vmem:[%s0 + $0x30] sm:$0xff]
  %v24 = vld [vmem:[%s0 + $0x38] sm:$0xff]
  %v25 = vld [vmem:[%s0 + $0x40] sm:$0xff]
  %v26 = vld [vmem:[%s0 + $0x48] sm:$0xff]
  %v27 = vld [vmem:[%s0 + $0x50] sm:$0xff]
  %v28 = vld [vmem:[%s0 + $0x58] sm:$0xff]
  %v29 = vld [vmem:[%s0 + $0x60] sm:$0xff]
  %v30 = vld [vmem:[%s0 + $0x68] sm:$0xff]
  %v31 = vld [vmem:[%s0 + $0x70] sm:$0xff]
  %v32 = vld [vmem:[%s0 + $0x78] sm:$0xff]
  %v33 = vld [vmem:[%s0 + $0x80] sm:$0xff]
  %v34 = vld [vmem:[%s0 + $0x88] sm:$0xff]
  %v35 = vld [vmem:[%s0 + $0x90] sm:$0xff]
  %v36 = vld [vmem:[%s0 + $0x98] sm:$0xff]
  %v37 = vld [vmem:[%s0 + $0xa0] sm:$0xff]
  %v38 = vld [vmem:[%s0 + $0xa8] sm:$0xff]
  %v39 = vld [vmem:[%s0 + $0xb0] sm:$0xff]
  %v40 = vld [vmem:[%s0 + $0xb8] sm:$0xff]
  %v41 = vld [vmem:[%s0 + $0xc0] sm:$0xff]
  %v42 = vld [vmem:[%s0 + $0xc8] sm:$0xff]
  %v43 = vld [vmem:[%s0 + $0xd0] sm:$0xff]
  %v44 = vld [vmem:[%s0 + $0xd8] sm:$0xff]
  %v45 = vld [vmem:[%s0 + $0xe0] sm:$0xff]
  %v46 = vld [vmem:[%s0 + $0xe8] sm:$0xff]
  %v47 = vld [vmem:[%s0 + $0xf0] sm:$0xff]
  %v48 = vld [vmem:[%s0 + $0xf8] sm:$0xff]
  %v49 = vld [vmem:[%s0 + $0x100] sm:$0xff]
  %v50 = vld [vmem:[%s0 + $0x108] sm:$0xff]
  %v51 = vld [vmem:[%s0 + $0x110] sm:$0xff]
  %v52 = vld [vmem:[%s0 + $0x118] sm:$0xff]
  %v53 = vld [vmem:[%s0 + $0x120] sm:$0xff]
  %v54 = vld [vmem:[%s0 + $0x128] sm:$0xff]
  %v55 = vld [vmem:[%s0 + $0x130] sm:$0xff]
  %v56 = vld [vmem:[%s0 + $0x138] sm:$0xff]
  %v57 = vld [vmem:[%s0 + $0x140] sm:$0xff]
  %v58 = vld [vmem:[%s0 + $0x148] sm:$0xff]
  %v59 = vld [vmem:[%s0 + $0x150] sm:$0xff]
  %v60 = vld [vmem:[%s0 + $0x158] sm:$0xff]
  %v61 = vld [vmem:[%s0 + $0x160] sm:$0xff]
  %v62 = vld [vmem:[%s0 + $0x168] sm:$0xff]
  %v63 = vld [vmem:[%s0 + $0x170] sm:$0xff]
  %v64 = vld [vmem:[%s0 + $0x178] sm:$0xff]
  %v65 = vld [vmem:[%s0 + $0x180] sm:$0xff]
  %v66 = vld [vmem:[%s0 + $0x188] sm:$0xff]
  %v67 = vld [vmem:[%s0 + $0x190] sm:$0xff]
  %v68 = vld [vmem:[%s0 + $0x198] sm:$0xff]
  %v69 = vld [vmem:[%s0 + $0x1a0] sm:$0xff]
  %v70 = vld [vmem:[%s0 + $0x1a8] sm:$0xff]
  %v71 = vld [vmem:[%s0 + $0x1b0] sm:$0xff]
  %v72 = vld [vmem:[%s0 + $0x1b8] sm:$0xff]
  %v73 = vld [vmem:[%s0 + $0x1c0] sm:$0xff]
  %v74 = vld [vmem:[%s0 + $0x1c8] sm:$0xff]
  %v75 = vld [vmem:[%s0 + $0x1d0] sm:$0xff]
  %v76 = vld [vmem:[%s0 + $0x1d8] sm:$0xff]
  %v77 = vld [vmem:[%s0 + $0x1e0] sm:$0xff]
  %v78 = vld [vmem:[%s0 + $0x1e8] sm:$0xff]
  %v79 = vld [vmem:[%s0 + $0x1f0] sm:$0xff]
  %v80 = vld [vmem:[%s0 + $0x1f8] sm:$0xff]
  %v81 = vld [vmem:[%s0 + $0x200] sm:$0xff]
  %v82 = vld [vmem:[%s0 + $0x208] sm:$0xff]
  %v83 = vld [vmem:[%s0 + $0x210] sm:$0xff]
  %v84 = vld [vmem:[%s0 + $0x218] sm:$0xff]
  %v85 = vld [vmem:[%s0 + $0x220] sm:$0xff]
  %v86 = vld [vmem:[%s0 + $0x228] sm:$0xff]
  %v87 = vld [vmem:[%s0 + $0x230] sm:$0xff]
  %v88 = vld [vmem:[%s0 + $0x238] sm:$0xff]
  %v89 = vld [vmem:[%s0 + $0x240] sm:$0xff]
  %v90 = vld [vmem:[%s0 + $0x248] sm:$0xff]
  %v91 = vld [vmem:[%s0 + $0x250] sm:$0xff]
  %v92 = vld [vmem:[%s0 + $0x258] sm:$0xff]
  %v93 = vld [vmem:[%s0 + $0x260] sm:$0xff]
  %v94 = vld [vmem:[%s0 + $0x268] sm:$0xff]
  %v95 = vld [vmem:[%s0 + $0x270] sm:$0xff]
  %v96 = vld [vmem:[%s0 + $0x278] sm:$0xff]
  %v97 = vld [vmem:[%s1] sm:$0xff]
  %v98 = vld [vmem:[%s1 + $0x8] sm:$0xff]
  %v99 = vld [vmem:[%s1 + $0x10] sm:$0xff]
  %v100 = vld [vmem:[%s1 + $0x18] sm:$0xff]
  %v101 = vld [vmem:[%s1 + $0x20] sm:$0xff]
  %v102 = vld [vmem:[%s1 + $0x28] sm:$0xff]
  %v103 = vld [vmem:[%s1 + $0x30] sm:$0xff]
  %v104 = vld [vmem:[%s1 + $0x38] sm:$0xff]
  %v105 = vld [vmem:[%s1 + $0x40] sm:$0xff]
  %v106 = vld [vmem:[%s1 + $0x48] sm:$0xff]
  %v107 = vld [vmem:[%s1 + $0x50] sm:$0xff]
  %v108 = vld [vmem:[%s1 + $0x58] sm:$0xff]
  %v109 = vld [vmem:[%s1 + $0x60] sm:$0xff]
  %v110 = vld [vmem:[%s1 + $0x68] sm:$0xff]
  %v111 = vld [vmem:[%s1 + $0x70] sm:$0xff]
  %v112 = vld [vmem:[%s1 + $0x78] sm:$0xff]
  %v113 = vld [vmem:[%s1 + $0x80] sm:$0xff]
  %v114 = vld [vmem:[%s1 + $0x88] sm:$0xff]
  %v115 = vld [vmem:[%s1 + $0x90] sm:$0xff]
  %v116 = vld [vmem:[%s1 + $0x98] sm:$0xff]
  %v117 = vld [vmem:[%s1 + $0xa0] sm:$0xff]
  %v118 = vld [vmem:[%s1 + $0xa8] sm:$0xff]
  %v119 = vld [vmem:[%s1 + $0xb0] sm:$0xff]
  %v120 = vld [vmem:[%s1 + $0xb8] sm:$0xff]
  %v121 = vld [vmem:[%s1 + $0xc0] sm:$0xff]
  %v122 = vld [vmem:[%s1 + $0xc8] sm:$0xff]
  %v123 = vld [vmem:[%s1 + $0xd0] sm:$0xff]
  %v124 = vld [vmem:[%s1 + $0xd8] sm:$0xff]
  %v125 = vld [vmem:[%s1 + $0xe0] sm:$0xff]
  %v126 = vld [vmem:[%s1 + $0xe8] sm:$0xff]
  %v127 = vld [vmem:[%s1 + $0xf0] sm:$0xff]
  %v128 = vld [vmem:[%s1 + $0xf8] sm:$0xff]
  %v129 = vld [vmem:[%s1 + $0x100] sm:$0xff]
  %v130 = vld [vmem:[%s1 + $0x108] sm:$0xff]
  %v131 = vld [vmem:[%s1 + $0x110] sm:$0xff]
  %v132 = vld [vmem:[%s1 + $0x118] sm:$0xff]
  %v133 = vld [vmem:[%s1 + $0x120] sm:$0xff]
  %v134 = vld [vmem:[%s1 + $0x128] sm:$0xff]
  %v135 = vld [vmem:[%s1 + $0x130] sm:$0xff]
  %v136 = vld [vmem:[%s1 + $0x138] sm:$0xff]
  %v137 = vld [vmem:[%s1 + $0x140] sm:$0xff]
  %v138 = vld [vmem:[%s1 + $0x148] sm:$0xff]
  %v139 = vld [vmem:[%s1 + $0x150] sm:$0xff]
  %v140 = vld [vmem:[%s1 + $0x158] sm:$0xff]
  %v141 = vld [vmem:[%s1 + $0x160] sm:$0xff]
  %v142 = vld [vmem:[%s1 + $0x168] sm:$0xff]
  %v143 = vld [vmem:[%s1 + $0x170] sm:$0xff]
  %v144 = vld [vmem:[%s1 + $0x178] sm:$0xff]
  %v145 = vld [vmem:[%s1 + $0x180] sm:$0xff]
  %v146 = vld [vmem:[%s1 + $0x188] sm:$0xff]
  %v147 = vld [vmem:[%s1 + $0x190] sm:$0xff]
  %v148 = vld [vmem:[%s1 + $0x198] sm:$0xff]
  %v149 = vld [vmem:[%s1 + $0x1a0] sm:$0xff]
  %v150 = vld [vmem:[%s1 + $0x1a8] sm:$0xff]
  %v151 = vld [vmem:[%s1 + $0x1b0] sm:$0xff]
  %v152 = vld [vmem:[%s1 + $0x1b8] sm:$0xff]
  %v153 = vld [vmem:[%s1 + $0x1c0] sm:$0xff]
  %v154 = vld [vmem:[%s1 + $0x1c8] sm:$0xff]
  %v155 = vld [vmem:[%s1 + $0x1d0] sm:$0xff]
  %v156 = vld [vmem:[%s1 + $0x1d8] sm:$0xff]
  %v157 = vld [vmem:[%s1 + $0x1e0] sm:$0xff]
  %v158 = vld [vmem:[%s1 + $0x1e8] sm:$0xff]
  %v159 = vld [vmem:[%s1 + $0x1f0] sm:$0xff]
  %v160 = vld [vmem:[%s1 + $0x1f8] sm:$0xff]
  %v161 = vld [vmem:[%s1 + $0x200] sm:$0xff]
  %v162 = vld [vmem:[%s1 + $0x208] sm:$0xff]
  %v163 = vld [vmem:[%s1 + $0x210] sm:$0xff]
  %v164 = vld [vmem:[%s1 + $0x218] sm:$0xff]
  %v165 = vld [vmem:[%s1 + $0x220] sm:$0xff]
  %v166 = vld [vmem:[%s1 + $0x228] sm:$0xff]
  %v167 = vld [vmem:[%s1 + $0x230] sm:$0xff]
  %v168 = vld [vmem:[%s1 + $0x238] sm:$0xff]
  %v169 = vld [vmem:[%s1 + $0x240] sm:$0xff]
  %v170 = vld [vmem:[%s1 + $0x248] sm:$0xff]
  %v171 = vld [vmem:[%s1 + $0x250] sm:$0xff]
  %v172 = vld [vmem:[%s1 + $0x258] sm:$0xff]
  %v173 = vld [vmem:[%s1 + $0x260] sm:$0xff]
  %v174 = vld [vmem:[%s1 + $0x268] sm:$0xff]
  %v175 = vld [vmem:[%s1 + $0x270] sm:$0xff]
  %v176 = vld [vmem:[%s1 + $0x278] sm:$0xff]
  %v177 = vld [vmem:[%s1 + $0x280] sm:$0xff]
  %v178 = vld [vmem:[%s1 + $0x288] sm:$0xff]
  %v179 = vld [vmem:[%s1 + $0x290] sm:$0xff]
  %v180 = vld [vmem:[%s1 + $0x298] sm:$0xff]
  %v181 = vld [vmem:[%s1 + $0x2a0] sm:$0xff]
  %v182 = vld [vmem:[%s1 + $0x2a8] sm:$0xff]
  %v183 = vld [vmem:[%s1 + $0x2b0] sm:$0xff]
  %v184 = vld [vmem:[%s1 + $0x2b8] sm:$0xff]
  %v185 = vld [vmem:[%s1 + $0x2c0] sm:$0xff]
  %v186 = vld [vmem:[%s1 + $0x2c8] sm:$0xff]
  %v187 = vld [vmem:[%s1 + $0x2d0] sm:$0xff]
  %v188 = vld [vmem:[%s1 + $0x2d8] sm:$0xff]
  %v189 = vld [vmem:[%s1 + $0x2e0] sm:$0xff]
  %v190 = vld [vmem:[%s1 + $0x2e8] sm:$0xff]
  %v191 = vld [vmem:[%s1 + $0x2f0] sm:$0xff]
  %v192 = vld [vmem:[%s1 + $0x2f8] sm:$0xff]
  %v193 = vld [vmem:[%s1 + $0x300] sm:$0xff]
  %v194 = vld [vmem:[%s1 + $0x308] sm:$0xff]
  %v195 = vld [vmem:[%s1 + $0x310] sm:$0xff]
  %v196 = vld [vmem:[%s1 + $0x318] sm:$0xff]
  %v197 = vld [vmem:[%s1 + $0x320] sm:$0xff]
  %v198 = vld [vmem:[%s1 + $0x328] sm:$0xff]
  %v199 = vld [vmem:[%s1 + $0x330] sm:$0xff]
  %v200 = vld [vmem:[%s1 + $0x338] sm:$0xff]
  %v201 = vld [vmem:[%s1 + $0x340] sm:$0xff]
  %v202 = vld [vmem:[%s1 + $0x348] sm:$0xff]
  %v203 = vld [vmem:[%s1 + $0x350] sm:$0xff]
  %v204 = vld [vmem:[%s1 + $0x358] sm:$0xff]
  %v205 = vld [vmem:[%s1 + $0x360] sm:$0xff]
  %v206 = vld [vmem:[%s1 + $0x368] sm:$0xff]
  %v207 = vld [vmem:[%s1 + $0x370] sm:$0xff]
  %v208 = vld [vmem:[%s1 + $0x378] sm:$0xff]
  %v209 = vld [vmem:[%s1 + $0x380] sm:$0xff]
  %v210 = vld [vmem:[%s1 + $0x388] sm:$0xff]
  %v211 = vld [vmem:[%s1 + $0x390] sm:$0xff]
  %v212 = vld [vmem:[%s1 + $0x398] sm:$0xff]
  %v213 = vld [vmem:[%s1 + $0x3a0] sm:$0xff]
  %v214 = vld [vmem:[%s1 + $0x3a8] sm:$0xff]
  %v215 = vld [vmem:[%s1 + $0x3b0] sm:$0xff]
  %v216 = vld [vmem:[%s1 + $0x3b8] sm:$0xff]
  %v217 = vld [vmem:[%s1 + $0x3c0] sm:$0xff]
  %v218 = vld [vmem:[%s1 + $0x3c8] sm:$0xff]
  %v219 = vld [vmem:[%s1 + $0x3d0] sm:$0xff]
  %v220 = vld [vmem:[%s1 + $0x3d8] sm:$0xff]
  %v221 = vld [vmem:[%s1 + $0x3e0] sm:$0xff]
  %v222 = vld [vmem:[%s1 + $0x3e8] sm:$0xff]
  %v223 = vld [vmem:[%s1 + $0x3f0] sm:$0xff]
  %v224 = vld [vmem:[%s1 + $0x3f8] sm:$0xff]
  %v225 = vld [vmem:[%s1 + $0x400] sm:$0xff]
  %v226 = vld [vmem:[%s1 + $0x408] sm:$0xff]
  %v227 = vld [vmem:[%s1 + $0x410] sm:$0xff]
  %v228 = vld [vmem:[%s1 + $0x418] sm:$0xff]
  %v229 = vld [vmem:[%s1 + $0x420] sm:$0xff]
  %v230 = vld [vmem:[%s1 + $0x428] sm:$0xff]
  %v231 = vld [vmem:[%s1 + $0x430] sm:$0xf]
  %v232 = vld [vmem:[%s1 + $0x438] sm:$0xf]
  %v233 = vld [vmem:[%s2] ss:$8 sm:$0x3]
  %v235 = vlaneseq
  %v236 = vshrl.u32 %v235, 7
  %v237 = vsub.s32 0, %v236
  %v238 = vrot.slane %v233, %v237
  %v239 = vlaneseq
  %v240 = vshrl.u32 %v239, 7
  %v241 = vsub.s32 1, %v240
  %v242 = vrot.slane %v233, %v241
  %vm245 = vcmask 228352
  %v247 = vsel %vm245, %v21, 0
  %v250 = vsel %vm245, %v26, 0
  %v253 = vsel %vm245, %v31, 0
  %v256 = vsel %vm245, %v36, 0
  %v259 = vsel %vm245, %v41, 0
  %v262 = vsel %vm245, %v46, 0
  %v265 = vsel %vm245, %v51, 0
  %v268 = vsel %vm245, %v56, 0
  %v271 = vsel %vm245, %v61, 0
  %v274 = vsel %vm245, %v66, 0
  %v277 = vsel %vm245, %v71, 0
  %v280 = vsel %vm245, %v76, 0
  %v283 = vsel %vm245, %v81, 0
  %v286 = vsel %vm245, %v86, 0
  %v289 = vsel %vm245, %v91, 0
  %v292 = vsel %vm245, %v96, 0
  %vm294 = vcmask 1043456
  %v296 = vsel %vm294, %v231, 0
  %v299 = vsel %vm294, %v232, 0
  %301 = vmatprep.subr.mxu0 %v98
  %302 = vmatpush1.msra.mxu0 %v97
  %303 = vmatprep.subr.mxu0 %v100
  %304 = vmatpush1.msra.mxu0 %v99
  %305 = vmatprep.subr.mxu0 %v102
  %306 = vmatpush1.msra.mxu0 %v101
  %307 = vmatprep.subr.mxu0 %v104
  %308 = vmatpush1.msra.mxu0 %v103
  %309 = vmatprep.subr.mxu0 %v106
  %310 = vmatpush1.msra.mxu0 %v105
  %311 = vmatprep.subr.mxu0 %v108
  %312 = vmatpush1.msra.mxu0 %v107
  %313 = vmatprep.subr.mxu0 %v110
  %314 = vmatpush1.msra.mxu0 %v109
  %315 = vmatprep.subr.mxu0 %v112
  %316 = vmatpush1.msra.mxu0 %v111
  %317 = vmatprep.subr.mxu0 %v114
  %318 = vmatpush1.msra.mxu0 %v113
  %319 = vmatprep.subr.mxu0 %v116
  %320 = vmatpush1.msra.mxu0 %v115
  %321 = vmatprep.subr.mxu0 %v118
  %322 = vmatpush1.msra.mxu0 %v117
  %323 = vmatprep.subr.mxu0 %v120
  %324 = vmatpush1.msra.mxu0 %v119
  %325 = vmatprep.subr.mxu0 %v122
  %326 = vmatpush1.msra.mxu0 %v121
  %327 = vmatprep.subr.mxu0 %v124
  %328 = vmatpush1.msra.mxu0 %v123
  %329 = vmatprep.subr.mxu0 %v126
  %330 = vmatpush1.msra.mxu0 %v125
  %331 = vmatprep.subr.mxu0 %v128
  %332 = vmatpush1.msra.mxu0 %v127
  %333 = vmatprep.subr.mxu0 %v130
  %334 = vmatpush1.msra.mxu0 %v129
  %335 = vmatprep.subr.mxu0 %v132
  %336 = vmatpush1.msra.mxu0 %v131
  %337 = vmatprep.subr.mxu0 %v134
  %338 = vmatpush1.msra.mxu0 %v133
  %339 = vmatprep.subr.mxu0 %v136
  %340 = vmatpush1.msra.mxu0 %v135
  %341 = vmatprep.subr.mxu0 %v138
  %342 = vmatpush1.msra.mxu0 %v137
  %343 = vmatprep.subr.mxu0 %v140
  %344 = vmatpush1.msra.mxu0 %v139
  %345 = vmatprep.subr.mxu0 %v142
  %346 = vmatpush1.msra.mxu0 %v141
  %347 = vmatprep.subr.mxu0 %v144
  %348 = vmatpush1.msra.mxu0 %v143
  %349 = vmatprep.subr.mxu0 %v146
  %350 = vmatpush1.msra.mxu0 %v145
  %351 = vmatprep.subr.mxu0 %v148
  %352 = vmatpush1.msra.mxu0 %v147
  %353 = vmatprep.subr.mxu0 %v150
  %354 = vmatpush1.msra.mxu0 %v149
  %355 = vmatprep.subr.mxu0 %v152
  %356 = vmatpush1.msra.mxu0 %v151
  %357 = vmatprep.subr.mxu0 %v154
  %358 = vmatpush1.msra.mxu0 %v153
  %359 = vmatprep.subr.mxu0 %v156
  %360 = vmatpush1.msra.mxu0 %v155
  %361 = vmatprep.subr.mxu0 %v158
  %362 = vmatpush1.msra.mxu0 %v157
  %363 = vmatprep.subr.mxu0 %v160
  %364 = vmatpush1.msra.mxu0 %v159
  %365 = vmatprep.mubr.f32.mxu0 %v18
  %366 = vmatmul.mubr.f32.gmra.mrb[0].mxu0 %v17
  %v367 = vpop.f32.mrb[0].mxu0
  %v368 = vadd.f32 %v238, %v367
  %v369 = vpop.f32.mrb[0].mxu0
  %v370 = vadd.f32 %v242, %v369
  %371 = vmatprep.mubr.f32.mxu0 %v23
  %372 = vmatmul.mubr.f32.gmra.mrb[0].mxu0 %v22
  %v373 = vpop.f32.mrb[0].mxu0
  %v374 = vadd.f32 %v238, %v373
  %v375 = vpop.f32.mrb[0].mxu0
  %v376 = vadd.f32 %v242, %v375
  %377 = vmatprep.mubr.f32.mxu0 %v28
  %378 = vmatmul.mubr.f32.gmra.mrb[0].mxu0 %v27
  %v379 = vpop.f32.mrb[0].mxu0
  %v380 = vadd.f32 %v238, %v379
  %v381 = vpop.f32.mrb[0].mxu0
  %v382 = vadd.f32 %v242, %v381
  %383 = vmatprep.mubr.f32.mxu0 %v33
  %384 = vmatmul.mubr.f32.gmra.mrb[0].mxu0 %v32
  %v385 = vpop.f32.mrb[0].mxu0
  %v386 = vadd.f32 %v238, %v385
  %v387 = vpop.f32.mrb[0].mxu0
  %v388 = vadd.f32 %v242, %v387
  %389 = vmatprep.mubr.f32.mxu0 %v38
  %390 = vmatmul.mubr.f32.gmra.mrb[0].mxu0 %v37
  %v391 = vpop.f32.mrb[0].mxu0
  %v392 = vadd.f32 %v238, %v391
  %v393 = vpop.f32.mrb[0].mxu0
  %v394 = vadd.f32 %v242, %v393
  %395 = vmatprep.mubr.f32.mxu0 %v43
  %396 = vmatmul.mubr.f32.gmra.mrb[0].mxu0 %v42
  %v397 = vpop.f32.mrb[0].mxu0
  %v398 = vadd.f32 %v238, %v397
  %v399 = vpop.f32.mrb[0].mxu0
  %v400 = vadd.f32 %v242, %v399
  %401 = vmatprep.mubr.f32.mxu0 %v48
  %402 = vmatmul.mubr.f32.gmra.mrb[0].mxu0 %v47
  %v403 = vpop.f32.mrb[0].mxu0
  %v404 = vadd.f32 %v238, %v403
  %v405 = vpop.f32.mrb[0].mxu0
  %v406 = vadd.f32 %v242, %v405
  %407 = vmatprep.mubr.f32.mxu0 %v53
  %408 = vmatmul.mubr.f32.gmra.mrb[0].mxu0 %v52
  %v409 = vpop.f32.mrb[0].mxu0
  %v410 = vadd.f32 %v238, %v409
  %v411 = vpop.f32.mrb[0].mxu0
  %v412 = vadd.f32 %v242, %v411
  %413 = vmatprep.mubr.f32.mxu0 %v58
  %414 = vmatmul.mubr.f32.gmra.mrb[0].mxu0 %v57
  %v415 = vpop.f32.mrb[0].mxu0
  %v416 = vadd.f32 %v238, %v415
  %v417 = vpop.f32.mrb[0].mxu0
  %v418 = vadd.f32 %v242, %v417
  %419 = vmatprep.mubr.f32.mxu0 %v63
  %420 = vmatmul.mubr.f32.gmra.mrb[0].mxu0 %v62
  %v421 = vpop.f32.mrb[0].mxu0
  %v422 = vadd.f32 %v238, %v421
  %v423 = vpop.f32.mrb[0].mxu0
  %v424 = vadd.f32 %v242, %v423
  %425 = vmatprep.mubr.f32.mxu0 %v68
  %426 = vmatmul.mubr.f32.gmra.mrb[0].mxu0 %v67
  %v427 = vpop.f32.mrb[0].mxu0
  %v428 = vadd.f32 %v238, %v427
  %v429 = vpop.f32.mrb[0].mxu0
  %v430 = vadd.f32 %v242, %v429
  %431 = vmatprep.mubr.f32.mxu0 %v73
  %432 = vmatmul.mubr.f32.gmra.mrb[0].mxu0 %v72
  %v433 = vpop.f32.mrb[0].mxu0
  %v434 = vadd.f32 %v238, %v433
  %v435 = vpop.f32.mrb[0].mxu0
  %v436 = vadd.f32 %v242, %v435
  %437 = vmatprep.mubr.f32.mxu0 %v78
  %438 = vmatmul.mubr.f32.gmra.mrb[0].mxu0 %v77
  %v439 = vpop.f32.mrb[0].mxu0
  %v440 = vadd.f32 %v238, %v439
  %v441 = vpop.f32.mrb[0].mxu0
  %v442 = vadd.f32 %v242, %v441
  %443 = vmatprep.mubr.f32.mxu0 %v83
  %444 = vmatmul.mubr.f32.gmra.mrb[0].mxu0 %v82
  %v445 = vpop.f32.mrb[0].mxu0
  %v446 = vadd.f32 %v238, %v445
  %v447 = vpop.f32.mrb[0].mxu0
  %v448 = vadd.f32 %v242, %v447
  %449 = vmatprep.mubr.f32.mxu0 %v88
  %450 = vmatmul.mubr.f32.gmra.mrb[0].mxu0 %v87
  %v451 = vpop.f32.mrb[0].mxu0
  %v452 = vadd.f32 %v238, %v451
  %v453 = vpop.f32.mrb[0].mxu0
  %v454 = vadd.f32 %v242, %v453
  %455 = vmatprep.mubr.f32.mxu0 %v93
  %456 = vmatmul.mubr.f32.gmra.mrb[0].mxu0 %v92
  %v457 = vpop.f32.mrb[0].mxu0
  %v458 = vadd.f32 %v238, %v457
  %v459 = vpop.f32.mrb[0].mxu0
  %v460 = vadd.f32 %v242, %v459
  %461 = vdwg.mxu0
  %462 = vmatprep.subr.mxu0 %v162
  %463 = vmatpush1.msra.mxu0 %v161
  %464 = vmatprep.subr.mxu0 %v164
  %465 = vmatpush1.msra.mxu0 %v163
  %466 = vmatprep.subr.mxu0 %v166
  %467 = vmatpush1.msra.mxu0 %v165
  %468 = vmatprep.subr.mxu0 %v168
  %469 = vmatpush1.msra.mxu0 %v167
  %470 = vmatprep.subr.mxu0 %v170
  %471 = vmatpush1.msra.mxu0 %v169
  %472 = vmatprep.subr.mxu0 %v172
  %473 = vmatpush1.msra.mxu0 %v171
  %474 = vmatprep.subr.mxu0 %v174
  %475 = vmatpush1.msra.mxu0 %v173
  %476 = vmatprep.subr.mxu0 %v176
  %477 = vmatpush1.msra.mxu0 %v175
  %478 = vmatprep.subr.mxu0 %v178
  %479 = vmatpush1.msra.mxu0 %v177
  %480 = vmatprep.subr.mxu0 %v180
  %481 = vmatpush1.msra.mxu0 %v179
  %482 = vmatprep.subr.mxu0 %v182
  %483 = vmatpush1.msra.mxu0 %v181
  %484 = vmatprep.subr.mxu0 %v184
  %485 = vmatpush1.msra.mxu0 %v183
  %486 = vmatprep.subr.mxu0 %v186
  %487 = vmatpush1.msra.mxu0 %v185
  %488 = vmatprep.subr.mxu0 %v188
  %489 = vmatpush1.msra.mxu0 %v187
  %490 = vmatprep.subr.mxu0 %v190
  %491 = vmatpush1.msra.mxu0 %v189
  %492 = vmatprep.subr.mxu0 %v192
  %493 = vmatpush1.msra.mxu0 %v191
  %494 = vmatprep.subr.mxu0 %v194
  %495 = vmatpush1.msra.mxu0 %v193
  %496 = vmatprep.subr.mxu0 %v196
  %497 = vmatpush1.msra.mxu0 %v195
  %498 = vmatprep.subr.mxu0 %v198
  %499 = vmatpush1.msra.mxu0 %v197
  %500 = vmatprep.subr.mxu0 %v200
  %501 = vmatpush1.msra.mxu0 %v199
  %502 = vmatprep.subr.mxu0 %v202
  %503 = vmatpush1.msra.mxu0 %v201
  %504 = vmatprep.subr.mxu0 %v204
  %505 = vmatpush1.msra.mxu0 %v203
  %506 = vmatprep.subr.mxu0 %v206
  %507 = vmatpush1.msra.mxu0 %v205
  %508 = vmatprep.subr.mxu0 %v208
  %509 = vmatpush1.msra.mxu0 %v207
  %510 = vmatprep.subr.mxu0 %v210
  %511 = vmatpush1.msra.mxu0 %v209
  %512 = vmatprep.subr.mxu0 %v212
  %513 = vmatpush1.msra.mxu0 %v211
  %514 = vmatprep.subr.mxu0 %v214
  %515 = vmatpush1.msra.mxu0 %v213
  %516 = vmatprep.subr.mxu0 %v216
  %517 = vmatpush1.msra.mxu0 %v215
  %518 = vmatprep.subr.mxu0 %v218
  %519 = vmatpush1.msra.mxu0 %v217
  %520 = vmatprep.subr.mxu0 %v220
  %521 = vmatpush1.msra.mxu0 %v219
  %522 = vmatprep.subr.mxu0 %v222
  %523 = vmatpush1.msra.mxu0 %v221
  %524 = vmatprep.subr.mxu0 %v224
  %525 = vmatpush1.msra.mxu0 %v223
  %526 = vmatprep.mubr.f32.mxu0 %v20
  %527 = vmatmul.mubr.f32.gmra.mrb[0].mxu0 %v19
  %v528 = vpop.f32.mrb[0].mxu0
  %v529 = vadd.f32 %v368, %v528
  %v530 = vpop.f32.mrb[0].mxu0
  %v531 = vadd.f32 %v370, %v530
  %532 = vmatprep.mubr.f32.mxu0 %v25
  %533 = vmatmul.mubr.f32.gmra.mrb[0].mxu0 %v24
  %v534 = vpop.f32.mrb[0].mxu0
  %v535 = vadd.f32 %v374, %v534
  %v536 = vpop.f32.mrb[0].mxu0
  %v537 = vadd.f32 %v376, %v536
  %538 = vmatprep.mubr.f32.mxu0 %v30
  %539 = vmatmul.mubr.f32.gmra.mrb[0].mxu0 %v29
  %v540 = vpop.f32.mrb[0].mxu0
  %v541 = vadd.f32 %v380, %v540
  %v542 = vpop.f32.mrb[0].mxu0
  %v543 = vadd.f32 %v382, %v542
  %544 = vmatprep.mubr.f32.mxu0 %v35
  %545 = vmatmul.mubr.f32.gmra.mrb[0].mxu0 %v34
  %v546 = vpop.f32.mrb[0].mxu0
  %v547 = vadd.f32 %v386, %v546
  %v548 = vpop.f32.mrb[0].mxu0
  %v549 = vadd.f32 %v388, %v548
  %550 = vmatprep.mubr.f32.mxu0 %v40
  %551 = vmatmul.mubr.f32.gmra.mrb[0].mxu0 %v39
  %v552 = vpop.f32.mrb[0].mxu0
  %v553 = vadd.f32 %v392, %v552
  %v554 = vpop.f32.mrb[0].mxu0
  %v555 = vadd.f32 %v394, %v554
  %556 = vmatprep.mubr.f32.mxu0 %v45
  %557 = vmatmul.mubr.f32.gmra.mrb[0].mxu0 %v44
  %v558 = vpop.f32.mrb[0].mxu0
  %v559 = vadd.f32 %v398, %v558
  %v560 = vpop.f32.mrb[0].mxu0
  %v561 = vadd.f32 %v400, %v560
  %562 = vmatprep.mubr.f32.mxu0 %v50
  %563 = vmatmul.mubr.f32.gmra.mrb[0].mxu0 %v49
  %v564 = vpop.f32.mrb[0].mxu0
  %v565 = vadd.f32 %v404, %v564
  %v566 = vpop.f32.mrb[0].mxu0
  %v567 = vadd.f32 %v406, %v566
  %568 = vmatprep.mubr.f32.mxu0 %v55
  %569 = vmatmul.mubr.f32.gmra.mrb[0].mxu0 %v54
  %v570 = vpop.f32.mrb[0].mxu0
  %v571 = vadd.f32 %v410, %v570
  %v572 = vpop.f32.mrb[0].mxu0
  %v573 = vadd.f32 %v412, %v572
  %574 = vmatprep.mubr.f32.mxu0 %v60
  %575 = vmatmul.mubr.f32.gmra.mrb[0].mxu0 %v59
  %v576 = vpop.f32.mrb[0].mxu0
  %v577 = vadd.f32 %v416, %v576
  %v578 = vpop.f32.mrb[0].mxu0
  %v579 = vadd.f32 %v418, %v578
  %580 = vmatprep.mubr.f32.mxu0 %v65
  %581 = vmatmul.mubr.f32.gmra.mrb[0].mxu0 %v64
  %v582 = vpop.f32.mrb[0].mxu0
  %v583 = vadd.f32 %v422, %v582
  %v584 = vpop.f32.mrb[0].mxu0
  %v585 = vadd.f32 %v424, %v584
  %586 = vmatprep.mubr.f32.mxu0 %v70
  %587 = vmatmul.mubr.f32.gmra.mrb[0].mxu0 %v69
  %v588 = vpop.f32.mrb[0].mxu0
  %v589 = vadd.f32 %v428, %v588
  %v590 = vpop.f32.mrb[0].mxu0
  %v591 = vadd.f32 %v430, %v590
  %592 = vmatprep.mubr.f32.mxu0 %v75
  %593 = vmatmul.mubr.f32.gmra.mrb[0].mxu0 %v74
  %v594 = vpop.f32.mrb[0].mxu0
  %v595 = vadd.f32 %v434, %v594
  %v596 = vpop.f32.mrb[0].mxu0
  %v597 = vadd.f32 %v436, %v596
  %598 = vmatprep.mubr.f32.mxu0 %v80
  %599 = vmatmul.mubr.f32.gmra.mrb[0].mxu0 %v79
  %v600 = vpop.f32.mrb[0].mxu0
  %v601 = vadd.f32 %v440, %v600
  %v602 = vpop.f32.mrb[0].mxu0
  %v603 = vadd.f32 %v442, %v602
  %604 = vmatprep.mubr.f32.mxu0 %v85
  %605 = vmatmul.mubr.f32.gmra.mrb[0].mxu0 %v84
  %v606 = vpop.f32.mrb[0].mxu0
  %v607 = vadd.f32 %v446, %v606
  %v608 = vpop.f32.mrb[0].mxu0
  %v609 = vadd.f32 %v448, %v608
  %610 = vmatprep.mubr.f32.mxu0 %v90
  %611 = vmatmul.mubr.f32.gmra.mrb[0].mxu0 %v89
  %v612 = vpop.f32.mrb[0].mxu0
  %v613 = vadd.f32 %v452, %v612
  %v614 = vpop.f32.mrb[0].mxu0
  %v615 = vadd.f32 %v454, %v614
  %616 = vmatprep.mubr.f32.mxu0 %v95
  %617 = vmatmul.mubr.f32.gmra.mrb[0].mxu0 %v94
  %v618 = vpop.f32.mrb[0].mxu0
  %v619 = vadd.f32 %v458, %v618
  %v620 = vpop.f32.mrb[0].mxu0
  %v621 = vadd.f32 %v460, %v620
  %622 = vdwg.mxu0
  %623 = vmatprep.subr.mxu0 %v226
  %624 = vmatpush1.msra.mxu0 %v225
  %625 = vmatprep.subr.mxu0 %v228
  %626 = vmatpush1.msra.mxu0 %v227
  %627 = vmatprep.subr.mxu0 %v230
  %628 = vmatpush1.msra.mxu0 %v229
  %629 = vmatprep.subr.mxu0 %v299
  %630 = vmatpush1.msra.mxu0 %v296
  %631 = vmatprep.subr.mxu0 0.0
  %632 = vmatpush1.msra.mxu0 0.0
  %633 = vmatprep.subr.mxu0 0.0
  %634 = vmatpush1.msra.mxu0 0.0
  %635 = vmatprep.subr.mxu0 0.0
  %636 = vmatpush1.msra.mxu0 0.0
  %637 = vmatprep.subr.mxu0 0.0
  %638 = vmatpush1.msra.mxu0 0.0
  %639 = vmatprep.subr.mxu0 0.0
  %640 = vmatpush1.msra.mxu0 0.0
  %641 = vmatprep.subr.mxu0 0.0
  %642 = vmatpush1.msra.mxu0 0.0
  %643 = vmatprep.subr.mxu0 0.0
  %644 = vmatpush1.msra.mxu0 0.0
  %645 = vmatprep.subr.mxu0 0.0
  %646 = vmatpush1.msra.mxu0 0.0
  %647 = vmatprep.subr.mxu0 0.0
  %648 = vmatpush1.msra.mxu0 0.0
  %649 = vmatprep.subr.mxu0 0.0
  %650 = vmatpush1.msra.mxu0 0.0
  %651 = vmatprep.subr.mxu0 0.0
  %652 = vmatpush1.msra.mxu0 0.0
  %653 = vmatprep.subr.mxu0 0.0
  %654 = vmatpush1.msra.mxu0 0.0
  %655 = vmatprep.subr.mxu0 0.0
  %656 = vmatpush1.msra.mxu0 0.0
  %657 = vmatprep.subr.mxu0 0.0
  %658 = vmatpush1.msra.mxu0 0.0
  %659 = vmatprep.subr.mxu0 0.0
  %660 = vmatpush1.msra.mxu0 0.0
  %661 = vmatprep.subr.mxu0 0.0
  %662 = vmatpush1.msra.mxu0 0.0
  %663 = vmatprep.subr.mxu0 0.0
  %664 = vmatpush1.msra.mxu0 0.0
  %665 = vmatprep.subr.mxu0 0.0
  %666 = vmatpush1.msra.mxu0 0.0
  %667 = vmatprep.subr.mxu0 0.0
  %668 = vmatpush1.msra.mxu0 0.0
  %669 = vmatprep.subr.mxu0 0.0
  %670 = vmatpush1.msra.mxu0 0.0
  %671 = vmatprep.subr.mxu0 0.0
  %672 = vmatpush1.msra.mxu0 0.0
  %673 = vmatprep.subr.mxu0 0.0
  %674 = vmatpush1.msra.mxu0 0.0
  %675 = vmatprep.subr.mxu0 0.0
  %676 = vmatpush1.msra.mxu0 0.0
  %677 = vmatprep.subr.mxu0 0.0
  %678 = vmatpush1.msra.mxu0 0.0
  %679 = vmatprep.subr.mxu0 0.0
  %680 = vmatpush1.msra.mxu0 0.0
  %681 = vmatprep.subr.mxu0 0.0
  %682 = vmatpush1.msra.mxu0 0.0
  %683 = vmatprep.subr.mxu0 0.0
  %684 = vmatpush1.msra.mxu0 0.0
  %685 = vmatprep.subr.mxu0 0.0
  %686 = vmatpush1.msra.mxu0 0.0
  %687 = vmatprep.mubr.f32.mxu0 0.0
  %688 = vmatmul.mubr.f32.gmra.mrb[0].mxu0 %v247
  %v689 = vpop.f32.mrb[0].mxu0
  %v690 = vadd.f32 %v529, %v689
  %v691 = vpop.f32.mrb[0].mxu0
  %v692 = vadd.f32 %v531, %v691
  %693 = vmatprep.mubr.f32.mxu0 0.0
  %694 = vmatmul.mubr.f32.gmra.mrb[0].mxu0 %v250
  %v695 = vpop.f32.mrb[0].mxu0
  %v696 = vadd.f32 %v535, %v695
  %v697 = vpop.f32.mrb[0].mxu0
  %v698 = vadd.f32 %v537, %v697
  %699 = vmatprep.mubr.f32.mxu0 0.0
  %700 = vmatmul.mubr.f32.gmra.mrb[0].mxu0 %v253
  %v701 = vpop.f32.mrb[0].mxu0
  %v702 = vadd.f32 %v541, %v701
  %v703 = vpop.f32.mrb[0].mxu0
  %v704 = vadd.f32 %v543, %v703
  %705 = vmatprep.mubr.f32.mxu0 0.0
  %706 = vmatmul.mubr.f32.gmra.mrb[0].mxu0 %v256
  %v707 = vpop.f32.mrb[0].mxu0
  %v708 = vadd.f32 %v547, %v707
  %v709 = vpop.f32.mrb[0].mxu0
  %v710 = vadd.f32 %v549, %v709
  %711 = vmatprep.mubr.f32.mxu0 0.0
  %712 = vmatmul.mubr.f32.gmra.mrb[0].mxu0 %v259
  %v713 = vpop.f32.mrb[0].mxu0
  %v714 = vadd.f32 %v553, %v713
  %v715 = vpop.f32.mrb[0].mxu0
  %v716 = vadd.f32 %v555, %v715
  %717 = vmatprep.mubr.f32.mxu0 0.0
  %718 = vmatmul.mubr.f32.gmra.mrb[0].mxu0 %v262
  %v719 = vpop.f32.mrb[0].mxu0
  %v720 = vadd.f32 %v559, %v719
  %v721 = vpop.f32.mrb[0].mxu0
  %v722 = vadd.f32 %v561, %v721
  %723 = vmatprep.mubr.f32.mxu0 0.0
  %724 = vmatmul.mubr.f32.gmra.mrb[0].mxu0 %v265
  %v725 = vpop.f32.mrb[0].mxu0
  %v726 = vadd.f32 %v565, %v725
  %v727 = vpop.f32.mrb[0].mxu0
  %v728 = vadd.f32 %v567, %v727
  %729 = vmatprep.mubr.f32.mxu0 0.0
  %730 = vmatmul.mubr.f32.gmra.mrb[0].mxu0 %v268
  %v731 = vpop.f32.mrb[0].mxu0
  %v732 = vadd.f32 %v571, %v731
  %v733 = vpop.f32.mrb[0].mxu0
  %v734 = vadd.f32 %v573, %v733
  %735 = vmatprep.mubr.f32.mxu0 0.0
  %736 = vmatmul.mubr.f32.gmra.mrb[0].mxu0 %v271
  %v737 = vpop.f32.mrb[0].mxu0
  %v738 = vadd.f32 %v577, %v737
  %v739 = vpop.f32.mrb[0].mxu0
  %v740 = vadd.f32 %v579, %v739
  %741 = vmatprep.mubr.f32.mxu0 0.0
  %742 = vmatmul.mubr.f32.gmra.mrb[0].mxu0 %v274
  %v743 = vpop.f32.mrb[0].mxu0
  %v744 = vadd.f32 %v583, %v743
  %v745 = vpop.f32.mrb[0].mxu0
  %v746 = vadd.f32 %v585, %v745
  %747 = vmatprep.mubr.f32.mxu0 0.0
  %748 = vmatmul.mubr.f32.gmra.mrb[0].mxu0 %v277
  %v749 = vpop.f32.mrb[0].mxu0
  %v750 = vadd.f32 %v589, %v749
  %v751 = vpop.f32.mrb[0].mxu0
  %v752 = vadd.f32 %v591, %v751
  %753 = vmatprep.mubr.f32.mxu0 0.0
  %754 = vmatmul.mubr.f32.gmra.mrb[0].mxu0 %v280
  %v755 = vpop.f32.mrb[0].mxu0
  %v756 = vadd.f32 %v595, %v755
  %v757 = vpop.f32.mrb[0].mxu0
  %v758 = vadd.f32 %v597, %v757
  %759 = vmatprep.mubr.f32.mxu0 0.0
  %760 = vmatmul.mubr.f32.gmra.mrb[0].mxu0 %v283
  %v761 = vpop.f32.mrb[0].mxu0
  %v762 = vadd.f32 %v601, %v761
  %v763 = vpop.f32.mrb[0].mxu0
  %v764 = vadd.f32 %v603, %v763
  %765 = vmatprep.mubr.f32.mxu0 0.0
  %766 = vmatmul.mubr.f32.gmra.mrb[0].mxu0 %v286
  %v767 = vpop.f32.mrb[0].mxu0
  %v768 = vadd.f32 %v607, %v767
  %v769 = vpop.f32.mrb[0].mxu0
  %v770 = vadd.f32 %v609, %v769
  %771 = vmatprep.mubr.f32.mxu0 0.0
  %772 = vmatmul.mubr.f32.gmra.mrb[0].mxu0 %v289
  %v773 = vpop.f32.mrb[0].mxu0
  %v774 = vadd.f32 %v613, %v773
  %v775 = vpop.f32.mrb[0].mxu0
  %v776 = vadd.f32 %v615, %v775
  %777 = vmatprep.mubr.f32.mxu0 0.0
  %778 = vmatmul.mubr.f32.gmra.mrb[0].mxu0 %v292
  %v779 = vpop.f32.mrb[0].mxu0
  %v780 = vadd.f32 %v619, %v779
  %v781 = vpop.f32.mrb[0].mxu0
  %v782 = vadd.f32 %v621, %v781
  %783 = vdwg.mxu0
  %v784 = vadd.f32 %v690, %v696
  %v785 = vadd.f32 %v784, %v702
  %v786 = vadd.f32 %v785, %v708
  %v787 = vadd.f32 %v786, %v714
  %v788 = vadd.f32 %v787, %v720
  %v789 = vadd.f32 %v788, %v726
  %v790 = vadd.f32 %v789, %v732
  %v791 = vadd.f32 %v790, %v738
  %v792 = vadd.f32 %v791, %v744
  %v793 = vadd.f32 %v792, %v750
  %v794 = vadd.f32 %v793, %v756
  %v795 = vadd.f32 %v794, %v762
  %v796 = vadd.f32 %v795, %v768
  %v797 = vadd.f32 %v796, %v774
  %v798 = vadd.f32 %v797, %v780
  %v799 = vrot.slane %v798, 4
  %v800 = vadd.f32 %v798, %v799
  %v801 = vrot.slane %v800, 2
  %v802 = vadd.f32 %v800, %v801
  %v803 = vrot.slane %v802, 1
  %v804 = vadd.f32 %v802, %v803
  %v805 = vadd.f32 %v692, %v698
  %v806 = vadd.f32 %v805, %v704
  %v807 = vadd.f32 %v806, %v710
  %v808 = vadd.f32 %v807, %v716
  %v809 = vadd.f32 %v808, %v722
  %v810 = vadd.f32 %v809, %v728
  %v811 = vadd.f32 %v810, %v734
  %v812 = vadd.f32 %v811, %v740
  %v813 = vadd.f32 %v812, %v746
  %v814 = vadd.f32 %v813, %v752
  %v815 = vadd.f32 %v814, %v758
  %v816 = vadd.f32 %v815, %v764
  %v817 = vadd.f32 %v816, %v770
  %v818 = vadd.f32 %v817, %v776
  %v819 = vadd.f32 %v818, %v782
  %v820 = vrot.slane %v819, 4
  %v821 = vadd.f32 %v819, %v820
  %v822 = vrot.slane %v821, 2
  %v823 = vadd.f32 %v821, %v822
  %v824 = vrot.slane %v823, 1
  %v825 = vadd.f32 %v823, %v824
  %v826 = vmul.f32 %v690, %v690
  %v827 = vmul.f32 %v692, %v692
  %v828 = vmul.f32 %v696, %v696
  %v829 = vmul.f32 %v698, %v698
  %v830 = vmul.f32 %v702, %v702
  %v831 = vmul.f32 %v704, %v704
  %v832 = vmul.f32 %v708, %v708
  %v833 = vmul.f32 %v710, %v710
  %v834 = vmul.f32 %v714, %v714
  %v835 = vmul.f32 %v716, %v716
  %v836 = vmul.f32 %v720, %v720
  %v837 = vmul.f32 %v722, %v722
  %v838 = vmul.f32 %v726, %v726
  %v839 = vmul.f32 %v728, %v728
  %v840 = vmul.f32 %v732, %v732
  %v841 = vmul.f32 %v734, %v734
  %v842 = vmul.f32 %v738, %v738
  %v843 = vmul.f32 %v740, %v740
  %v844 = vmul.f32 %v744, %v744
  %v845 = vmul.f32 %v746, %v746
  %v846 = vmul.f32 %v750, %v750
  %v847 = vmul.f32 %v752, %v752
  %v848 = vmul.f32 %v756, %v756
  %v849 = vmul.f32 %v758, %v758
  %v850 = vmul.f32 %v762, %v762
  %v851 = vmul.f32 %v764, %v764
  %v852 = vmul.f32 %v768, %v768
  %v853 = vmul.f32 %v770, %v770
  %v854 = vmul.f32 %v774, %v774
  %v855 = vmul.f32 %v776, %v776
  %v856 = vmul.f32 %v780, %v780
  %v857 = vmul.f32 %v782, %v782
  %v858 = vadd.f32 %v826, %v828
  %v859 = vadd.f32 %v858, %v830
  %v860 = vadd.f32 %v859, %v832
  %v861 = vadd.f32 %v860, %v834
  %v862 = vadd.f32 %v861, %v836
  %v863 = vadd.f32 %v862, %v838
  %v864 = vadd.f32 %v863, %v840
  %v865 = vadd.f32 %v864, %v842
  %v866 = vadd.f32 %v865, %v844
  %v867 = vadd.f32 %v866, %v846
  %v868 = vadd.f32 %v867, %v848
  %v869 = vadd.f32 %v868, %v850
  %v870 = vadd.f32 %v869, %v852
  %v871 = vadd.f32 %v870, %v854
  %v872 = vadd.f32 %v871, %v856
  %v873 = vrot.slane %v872, 4
  %v874 = vadd.f32 %v872, %v873
  %v875 = vrot.slane %v874, 2
  %v876 = vadd.f32 %v874, %v875
  %v877 = vrot.slane %v876, 1
  %v878 = vadd.f32 %v876, %v877
  %v879 = vadd.f32 %v827, %v829
  %v880 = vadd.f32 %v879, %v831
  %v881 = vadd.f32 %v880, %v833
  %v882 = vadd.f32 %v881, %v835
  %v883 = vadd.f32 %v882, %v837
  %v884 = vadd.f32 %v883, %v839
  %v885 = vadd.f32 %v884, %v841
  %v886 = vadd.f32 %v885, %v843
  %v887 = vadd.f32 %v886, %v845
  %v888 = vadd.f32 %v887, %v847
  %v889 = vadd.f32 %v888, %v849
  %v890 = vadd.f32 %v889, %v851
  %v891 = vadd.f32 %v890, %v853
  %v892 = vadd.f32 %v891, %v855
  %v893 = vadd.f32 %v892, %v857
  %v894 = vrot.slane %v893, 4
  %v895 = vadd.f32 %v893, %v894
  %v896 = vrot.slane %v895, 2
  %v897 = vadd.f32 %v895, %v896
  %v898 = vrot.slane %v897, 1
  %v899 = vadd.f32 %v897, %v898
  %v900 = vld [vmem:[%s3] sm:$0xff]
  %v901 = vld [vmem:[%s3 + $0x8] sm:$0xff]
  %v902 = vld [vmem:[%s3 + $0x10] sm:$0xff]
  %v903 = vld [vmem:[%s3 + $0x18] sm:$0xff]
  %v904 = vld [vmem:[%s3 + $0x20] sm:$0xff]
  %v905 = vld [vmem:[%s3 + $0x28] sm:$0xff]
  %v906 = vld [vmem:[%s3 + $0x30] sm:$0xff]
  %v907 = vld [vmem:[%s3 + $0x38] sm:$0xff]
  %v908 = vld [vmem:[%s3 + $0x40] sm:$0xff]
  %v909 = vld [vmem:[%s3 + $0x48] sm:$0xff]
  %v910 = vld [vmem:[%s3 + $0x50] sm:$0xff]
  %v911 = vld [vmem:[%s3 + $0x58] sm:$0xff]
  %v912 = vld [vmem:[%s3 + $0x60] sm:$0xff]
  %v913 = vld [vmem:[%s3 + $0x68] sm:$0xff]
  %v914 = vld [vmem:[%s3 + $0x70] sm:$0xff]
  %v915 = vld [vmem:[%s3 + $0x78] sm:$0xff]
  %v916 = vld [vmem:[%s3 + $0x80] sm:$0xff]
  %v917 = vld [vmem:[%s3 + $0x88] sm:$0xff]
  %v918 = vld [vmem:[%s3 + $0x90] sm:$0xff]
  %v919 = vld [vmem:[%s3 + $0x98] sm:$0xff]
  %v920 = vld [vmem:[%s3 + $0xa0] sm:$0xff]
  %v921 = vld [vmem:[%s3 + $0xa8] sm:$0xff]
  %v922 = vld [vmem:[%s3 + $0xb0] sm:$0xff]
  %v923 = vld [vmem:[%s3 + $0xb8] sm:$0xff]
  %v924 = vld [vmem:[%s3 + $0xc0] sm:$0xff]
  %v925 = vld [vmem:[%s3 + $0xc8] sm:$0xff]
  %v926 = vld [vmem:[%s3 + $0xd0] sm:$0xff]
  %v927 = vld [vmem:[%s3 + $0xd8] sm:$0xff]
  %v928 = vld [vmem:[%s3 + $0xe0] sm:$0xff]
  %v929 = vld [vmem:[%s3 + $0xe8] sm:$0xff]
  %v930 = vld [vmem:[%s3 + $0xf0] sm:$0xff]
  %v931 = vld [vmem:[%s3 + $0xf8] sm:$0xff]
  %v932 = vld [vmem:[%s3 + $0x100] sm:$0xff]
  %v933 = vld [vmem:[%s3 + $0x108] sm:$0xff]
  %v934 = vld [vmem:[%s3 + $0x110] sm:$0xff]
  %v935 = vld [vmem:[%s3 + $0x118] sm:$0xff]
  %v936 = vld [vmem:[%s3 + $0x120] sm:$0xff]
  %v937 = vld [vmem:[%s3 + $0x128] sm:$0xff]
  %v938 = vld [vmem:[%s3 + $0x130] sm:$0xff]
  %v939 = vld [vmem:[%s3 + $0x138] sm:$0xff]
  %v940 = vld [vmem:[%s3 + $0x140] sm:$0xff]
  %v941 = vld [vmem:[%s3 + $0x148] sm:$0xff]
  %v942 = vld [vmem:[%s3 + $0x150] sm:$0xff]
  %v943 = vld [vmem:[%s3 + $0x158] sm:$0xff]
  %v944 = vld [vmem:[%s3 + $0x160] sm:$0xff]
  %v945 = vld [vmem:[%s3 + $0x168] sm:$0xff]
  %v946 = vld [vmem:[%s3 + $0x170] sm:$0xff]
  %v947 = vld [vmem:[%s3 + $0x178] sm:$0xff]
  %v948 = vld [vmem:[%s3 + $0x180] sm:$0xff]
  %v949 = vld [vmem:[%s3 + $0x188] sm:$0xff]
  %v950 = vld [vmem:[%s3 + $0x190] sm:$0xff]
  %v951 = vld [vmem:[%s3 + $0x198] sm:$0xff]
  %v952 = vld [vmem:[%s3 + $0x1a0] sm:$0xff]
  %v953 = vld [vmem:[%s3 + $0x1a8] sm:$0xff]
  %v954 = vld [vmem:[%s3 + $0x1b0] sm:$0xff]
  %v955 = vld [vmem:[%s3 + $0x1b8] sm:$0xff]
  %v956 = vld [vmem:[%s3 + $0x1c0] sm:$0xff]
  %v957 = vld [vmem:[%s3 + $0x1c8] sm:$0xff]
  %v958 = vld [vmem:[%s3 + $0x1d0] sm:$0xff]
  %v959 = vld [vmem:[%s3 + $0x1d8] sm:$0xff]
  %v960 = vld [vmem:[%s3 + $0x1e0] sm:$0xff]
  %v961 = vld [vmem:[%s3 + $0x1e8] sm:$0xff]
  %v962 = vld [vmem:[%s3 + $0x1f0] sm:$0xff]
  %v963 = vld [vmem:[%s3 + $0x1f8] sm:$0xff]
  %964 = vmatprep.subr.mxu0 %v901
  %965 = vmatpush1.msra.mxu0 %v900
  %966 = vmatprep.subr.mxu0 %v903
  %967 = vmatpush1.msra.mxu0 %v902
  %968 = vmatprep.subr.mxu0 %v905
  %969 = vmatpush1.msra.mxu0 %v904
  %970 = vmatprep.subr.mxu0 %v907
  %971 = vmatpush1.msra.mxu0 %v906
  %972 = vmatprep.subr.mxu0 %v909
  %973 = vmatpush1.msra.mxu0 %v908
  %974 = vmatprep.subr.mxu0 %v911
  %975 = vmatpush1.msra.mxu0 %v910
  %976 = vmatprep.subr.mxu0 %v913
  %977 = vmatpush1.msra.mxu0 %v912
  %978 = vmatprep.subr.mxu0 %v915
  %979 = vmatpush1.msra.mxu0 %v914
  %980 = vmatprep.subr.mxu0 %v917
  %981 = vmatpush1.msra.mxu0 %v916
  %982 = vmatprep.subr.mxu0 %v919
  %983 = vmatpush1.msra.mxu0 %v918
  %984 = vmatprep.subr.mxu0 %v921
  %985 = vmatpush1.msra.mxu0 %v920
  %986 = vmatprep.subr.mxu0 %v923
  %987 = vmatpush1.msra.mxu0 %v922
  %988 = vmatprep.subr.mxu0 %v925
  %989 = vmatpush1.msra.mxu0 %v924
  %990 = vmatprep.subr.mxu0 %v927
  %991 = vmatpush1.msra.mxu0 %v926
  %992 = vmatprep.subr.mxu0 %v929
  %993 = vmatpush1.msra.mxu0 %v928
  %994 = vmatprep.subr.mxu0 %v931
  %995 = vmatpush1.msra.mxu0 %v930
  %996 = vmatprep.subr.mxu0 %v933
  %997 = vmatpush1.msra.mxu0 %v932
  %998 = vmatprep.subr.mxu0 %v935
  %999 = vmatpush1.msra.mxu0 %v934
  %1000 = vmatprep.subr.mxu0 %v937
  %1001 = vmatpush1.msra.mxu0 %v936
  %1002 = vmatprep.subr.mxu0 %v939
  %1003 = vmatpush1.msra.mxu0 %v938
  %1004 = vmatprep.subr.mxu0 %v941
  %1005 = vmatpush1.msra.mxu0 %v940
  %1006 = vmatprep.subr.mxu0 %v943
  %1007 = vmatpush1.msra.mxu0 %v942
  %1008 = vmatprep.subr.mxu0 %v945
  %1009 = vmatpush1.msra.mxu0 %v944
  %1010 = vmatprep.subr.mxu0 %v947
  %1011 = vmatpush1.msra.mxu0 %v946
  %1012 = vmatprep.subr.mxu0 %v949
  %1013 = vmatpush1.msra.mxu0 %v948
  %1014 = vmatprep.subr.mxu0 %v951
  %1015 = vmatpush1.msra.mxu0 %v950
  %1016 = vmatprep.subr.mxu0 %v953
  %1017 = vmatpush1.msra.mxu0 %v952
  %1018 = vmatprep.subr.mxu0 %v955
  %1019 = vmatpush1.msra.mxu0 %v954
  %1020 = vmatprep.subr.mxu0 %v957
  %1021 = vmatpush1.msra.mxu0 %v956
  %1022 = vmatprep.subr.mxu0 %v959
  %1023 = vmatpush1.msra.mxu0 %v958
  %1024 = vmatprep.subr.mxu0 %v961
  %1025 = vmatpush1.msra.mxu0 %v960
  %1026 = vmatprep.subr.mxu0 %v963
  %1027 = vmatpush1.msra.mxu0 %v962
  %1028 = vmatprep.mubr.f32.mxu0 %v825
  %1029 = vmatmul.mubr.f32.gmra.mrb[0].mxu0 %v804
  %v1030 = vpop.f32.mrb[0].mxu0
  %v1031 = vadd.f32 0.0, %v1030
  %v1032 = vpop.f32.mrb[0].mxu0
  %v1033 = vadd.f32 0.0, %v1032
  %1034 = vdwg.mxu0
  %v1035 = vmul.f32 %v1031, 0.00078125
  %v1036 = vmul.f32 %v1033, 0.00078125
  %1037 = vmatprep.subr.mxu0 %v901
  %1038 = vmatpush1.msra.mxu0 %v900
  %1039 = vmatprep.subr.mxu0 %v903
  %1040 = vmatpush1.msra.mxu0 %v902
  %1041 = vmatprep.subr.mxu0 %v905
  %1042 = vmatpush1.msra.mxu0 %v904
  %1043 = vmatprep.subr.mxu0 %v907
  %1044 = vmatpush1.msra.mxu0 %v906
  %1045 = vmatprep.subr.mxu0 %v909
  %1046 = vmatpush1.msra.mxu0 %v908
  %1047 = vmatprep.subr.mxu0 %v911
  %1048 = vmatpush1.msra.mxu0 %v910
  %1049 = vmatprep.subr.mxu0 %v913
  %1050 = vmatpush1.msra.mxu0 %v912
  %1051 = vmatprep.subr.mxu0 %v915
  %1052 = vmatpush1.msra.mxu0 %v914
  %1053 = vmatprep.subr.mxu0 %v917
  %1054 = vmatpush1.msra.mxu0 %v916
  %1055 = vmatprep.subr.mxu0 %v919
  %1056 = vmatpush1.msra.mxu0 %v918
  %1057 = vmatprep.subr.mxu0 %v921
  %1058 = vmatpush1.msra.mxu0 %v920
  %1059 = vmatprep.subr.mxu0 %v923
  %1060 = vmatpush1.msra.mxu0 %v922
  %1061 = vmatprep.subr.mxu0 %v925
  %1062 = vmatpush1.msra.mxu0 %v924
  %1063 = vmatprep.subr.mxu0 %v927
  %1064 = vmatpush1.msra.mxu0 %v926
  %1065 = vmatprep.subr.mxu0 %v929
  %1066 = vmatpush1.msra.mxu0 %v928
  %1067 = vmatprep.subr.mxu0 %v931
  %1068 = vmatpush1.msra.mxu0 %v930
  %1069 = vmatprep.subr.mxu0 %v933
  %1070 = vmatpush1.msra.mxu0 %v932
  %1071 = vmatprep.subr.mxu0 %v935
  %1072 = vmatpush1.msra.mxu0 %v934
  %1073 = vmatprep.subr.mxu0 %v937
  %1074 = vmatpush1.msra.mxu0 %v936
  %1075 = vmatprep.subr.mxu0 %v939
  %1076 = vmatpush1.msra.mxu0 %v938
  %1077 = vmatprep.subr.mxu0 %v941
  %1078 = vmatpush1.msra.mxu0 %v940
  %1079 = vmatprep.subr.mxu0 %v943
  %1080 = vmatpush1.msra.mxu0 %v942
  %1081 = vmatprep.subr.mxu0 %v945
  %1082 = vmatpush1.msra.mxu0 %v944
  %1083 = vmatprep.subr.mxu0 %v947
  %1084 = vmatpush1.msra.mxu0 %v946
  %1085 = vmatprep.subr.mxu0 %v949
  %1086 = vmatpush1.msra.mxu0 %v948
  %1087 = vmatprep.subr.mxu0 %v951
  %1088 = vmatpush1.msra.mxu0 %v950
  %1089 = vmatprep.subr.mxu0 %v953
  %1090 = vmatpush1.msra.mxu0 %v952
  %1091 = vmatprep.subr.mxu0 %v955
  %1092 = vmatpush1.msra.mxu0 %v954
  %1093 = vmatprep.subr.mxu0 %v957
  %1094 = vmatpush1.msra.mxu0 %v956
  %1095 = vmatprep.subr.mxu0 %v959
  %1096 = vmatpush1.msra.mxu0 %v958
  %1097 = vmatprep.subr.mxu0 %v961
  %1098 = vmatpush1.msra.mxu0 %v960
  %1099 = vmatprep.subr.mxu0 %v963
  %1100 = vmatpush1.msra.mxu0 %v962
  %1101 = vmatprep.mubr.f32.mxu0 %v899
  %1102 = vmatmul.mubr.f32.gmra.mrb[0].mxu0 %v878
  %v1103 = vpop.f32.mrb[0].mxu0
  %v1104 = vadd.f32 0.0, %v1103
  %v1105 = vpop.f32.mrb[0].mxu0
  %v1106 = vadd.f32 0.0, %v1105
  %1107 = vdwg.mxu0
  %v1108 = vmul.f32 %v1104, 0.00078125
  %v1109 = vmul.f32 %v1106, 0.00078125
  %v1110 = vmul.f32 %v1035, %v1035
  %v1111 = vmul.f32 %v1036, %v1036
  %v1112 = vsub.f32 %v1108, %v1110
  %v1113 = vsub.f32 %v1109, %v1111
  %v1114 = vadd.f32 %v1112, 1e-05
  %v1115 = vadd.f32 %v1113, 1e-05
  %v1116 = vrsqrt.pop %v1114
  %v1117 = vrsqrt.pop %v1115
  %s1118 = scalar_lea.vmem %s2, 1
  %v1119 = vld [vmem:[%s1118] ss:$8 sm:$0x3]
  %v1122 = vcombine.low %v1116, %v1117
  %v1124 = vunpack.c.l.s4 1966171168
  %v1125 = vunpack.c.0.s8 %v1124
  %v1126 = vlaneseq
  %v1127 = vshrl.u32 %v1126, 7
  %v1128 = vsub.s32 %v1125, %v1127
  %v1129 = vrot.slane %v1122, %v1128
  %v1131 = vunpack.c.l.s4 1966171168
  %v1132 = vunpack.c.0.s8 %v1131
  %v1133 = vlaneseq
  %v1134 = vshrl.u32 %v1133, 7
  %v1135 = vsub.s32 %v1132, %v1134
  %v1136 = vrot.slane %v1129, %v1135
  %v1138 = vmul.f32 %v1119, %v1136
  %s1139 = scalar_lea.vmem %s2, 2
  %v1140 = vld [vmem:[%s1139] ss:$8 sm:$0x3]
  %v1142 = vlaneseq
  %v1143 = vshrl.u32 %v1142, 7
  %v1144 = vsub.s32 0, %v1143
  %v1145 = vrot.slane %v1138, %v1144
  %v1146 = vlaneseq
  %v1147 = vshrl.u32 %v1146, 7
  %v1148 = vsub.s32 1, %v1147
  %v1149 = vrot.slane %v1138, %v1148
  %v1152 = vmul.f32 %v1035, %v1145
  %v1153 = vmul.f32 %v1036, %v1149
  %v1156 = vcombine.low %v1152, %v1153
  %v1158 = vunpack.c.l.s4 1966171168
  %v1159 = vunpack.c.0.s8 %v1158
  %v1160 = vlaneseq
  %v1161 = vshrl.u32 %v1160, 7
  %v1162 = vsub.s32 %v1159, %v1161
  %v1163 = vrot.slane %v1156, %v1162
  %v1165 = vunpack.c.l.s4 1966171168
  %v1166 = vunpack.c.0.s8 %v1165
  %v1167 = vlaneseq
  %v1168 = vshrl.u32 %v1167, 7
  %v1169 = vsub.s32 %v1166, %v1168
  %v1170 = vrot.slane %v1163, %v1169
  %v1172 = vsub.f32 %v1140, %v1170
  %v1173 = vmul.f32 %v690, %v1145
  %v1174 = vmul.f32 %v692, %v1149
  %v1175 = vmul.f32 %v696, %v1145
  %v1176 = vmul.f32 %v698, %v1149
  %v1177 = vmul.f32 %v702, %v1145
  %v1178 = vmul.f32 %v704, %v1149
  %v1179 = vmul.f32 %v708, %v1145
  %v1180 = vmul.f32 %v710, %v1149
  %v1181 = vmul.f32 %v714, %v1145
  %v1182 = vmul.f32 %v716, %v1149
  %v1183 = vmul.f32 %v720, %v1145
  %v1184 = vmul.f32 %v722, %v1149
  %v1185 = vmul.f32 %v726, %v1145
  %v1186 = vmul.f32 %v728, %v1149
  %v1187 = vmul.f32 %v732, %v1145
  %v1188 = vmul.f32 %v734, %v1149
  %v1189 = vmul.f32 %v738, %v1145
  %v1190 = vmul.f32 %v740, %v1149
  %v1191 = vmul.f32 %v744, %v1145
  %v1192 = vmul.f32 %v746, %v1149
  %v1193 = vmul.f32 %v750, %v1145
  %v1194 = vmul.f32 %v752, %v1149
  %v1195 = vmul.f32 %v756, %v1145
  %v1196 = vmul.f32 %v758, %v1149
  %v1197 = vmul.f32 %v762, %v1145
  %v1198 = vmul.f32 %v764, %v1149
  %v1199 = vmul.f32 %v768, %v1145
  %v1200 = vmul.f32 %v770, %v1149
  %v1201 = vmul.f32 %v774, %v1145
  %v1202 = vmul.f32 %v776, %v1149
  %v1203 = vmul.f32 %v780, %v1145
  %v1204 = vmul.f32 %v782, %v1149
  %v1206 = vlaneseq
  %v1207 = vshrl.u32 %v1206, 7
  %v1208 = vsub.s32 0, %v1207
  %v1209 = vrot.slane %v1172, %v1208
  %v1210 = vlaneseq
  %v1211 = vshrl.u32 %v1210, 7
  %v1212 = vsub.s32 1, %v1211
  %v1213 = vrot.slane %v1172, %v1212
  %v1216 = vadd.f32 %v1173, %v1209
  %v1217 = vadd.f32 %v1174, %v1213
  %v1218 = vadd.f32 %v1175, %v1209
  %v1219 = vadd.f32 %v1176, %v1213
  %v1220 = vadd.f32 %v1177, %v1209
  %v1221 = vadd.f32 %v1178, %v1213
  %v1222 = vadd.f32 %v1179, %v1209
  %v1223 = vadd.f32 %v1180, %v1213
  %v1224 = vadd.f32 %v1181, %v1209
  %v1225 = vadd.f32 %v1182, %v1213
  %v1226 = vadd.f32 %v1183, %v1209
  %v1227 = vadd.f32 %v1184, %v1213
  %v1228 = vadd.f32 %v1185, %v1209
  %v1229 = vadd.f32 %v1186, %v1213
  %v1230 = vadd.f32 %v1187, %v1209
  %v1231 = vadd.f32 %v1188, %v1213
  %v1232 = vadd.f32 %v1189, %v1209
  %v1233 = vadd.f32 %v1190, %v1213
  %v1234 = vadd.f32 %v1191, %v1209
  %v1235 = vadd.f32 %v1192, %v1213
  %v1236 = vadd.f32 %v1193, %v1209
  %v1237 = vadd.f32 %v1194, %v1213
  %v1238 = vadd.f32 %v1195, %v1209
  %v1239 = vadd.f32 %v1196, %v1213
  %v1240 = vadd.f32 %v1197, %v1209
  %v1241 = vadd.f32 %v1198, %v1213
  %v1242 = vadd.f32 %v1199, %v1209
  %v1243 = vadd.f32 %v1200, %v1213
  %v1244 = vadd.f32 %v1201, %v1209
  %v1245 = vadd.f32 %v1202, %v1213
  %v1246 = vadd.f32 %v1203, %v1209
  %v1247 = vadd.f32 %v1204, %v1213
  %v1248 = vmax.f32 %v1216, 0.0
  %v1249 = vmax.f32 %v1217, 0.0
  %v1250 = vmax.f32 %v1218, 0.0
  %v1251 = vmax.f32 %v1219, 0.0
  %v1252 = vmax.f32 %v1220, 0.0
  %v1253 = vmax.f32 %v1221, 0.0
  %v1254 = vmax.f32 %v1222, 0.0
  %v1255 = vmax.f32 %v1223, 0.0
  %v1256 = vmax.f32 %v1224, 0.0
  %v1257 = vmax.f32 %v1225, 0.0
  %v1258 = vmax.f32 %v1226, 0.0
  %v1259 = vmax.f32 %v1227, 0.0
  %v1260 = vmax.f32 %v1228, 0.0
  %v1261 = vmax.f32 %v1229, 0.0
  %v1262 = vmax.f32 %v1230, 0.0
  %v1263 = vmax.f32 %v1231, 0.0
  %v1264 = vmax.f32 %v1232, 0.0
  %v1265 = vmax.f32 %v1233, 0.0
  %v1266 = vmax.f32 %v1234, 0.0
  %v1267 = vmax.f32 %v1235, 0.0
  %v1268 = vmax.f32 %v1236, 0.0
  %v1269 = vmax.f32 %v1237, 0.0
  %v1270 = vmax.f32 %v1238, 0.0
  %v1271 = vmax.f32 %v1239, 0.0
  %v1272 = vmax.f32 %v1240, 0.0
  %v1273 = vmax.f32 %v1241, 0.0
  %v1274 = vmax.f32 %v1242, 0.0
  %v1275 = vmax.f32 %v1243, 0.0
  %v1276 = vmax.f32 %v1244, 0.0
  %v1277 = vmax.f32 %v1245, 0.0
  %v1278 = vmax.f32 %v1246, 0.0
  %v1279 = vmax.f32 %v1247, 0.0
  %1280 = vst [vmem:[%s4] sm:$0xff] %v1248
  %1281 = vst [vmem:[%s4 + $0x8] sm:$0xff] %v1249
  %1282 = vst [vmem:[%s4 + $0x10] sm:$0xff] %v1250
  %1283 = vst [vmem:[%s4 + $0x18] sm:$0xff] %v1251
  %1284 = vst [vmem:[%s4 + $0x20] sm:$0xff] %v1252
  %1285 = vst [vmem:[%s4 + $0x28] sm:$0xff] %v1253
  %1286 = vst [vmem:[%s4 + $0x30] sm:$0xff] %v1254
  %1287 = vst [vmem:[%s4 + $0x38] sm:$0xff] %v1255
  %1288 = vst [vmem:[%s4 + $0x40] sm:$0xff] %v1256
  %1289 = vst [vmem:[%s4 + $0x48] sm:$0xff] %v1257
  %1290 = vst [vmem:[%s4 + $0x50] sm:$0xff] %v1258
  %1291 = vst [vmem:[%s4 + $0x58] sm:$0xff] %v1259
  %1292 = vst [vmem:[%s4 + $0x60] sm:$0xff] %v1260
  %1293 = vst [vmem:[%s4 + $0x68] sm:$0xff] %v1261
  %1294 = vst [vmem:[%s4 + $0x70] sm:$0xff] %v1262
  %1295 = vst [vmem:[%s4 + $0x78] sm:$0xff] %v1263
  %1296 = vst [vmem:[%s4 + $0x80] sm:$0xff] %v1264
  %1297 = vst [vmem:[%s4 + $0x88] sm:$0xff] %v1265
  %1298 = vst [vmem:[%s4 + $0x90] sm:$0xff] %v1266
  %1299 = vst [vmem:[%s4 + $0x98] sm:$0xff] %v1267
  %1300 = vst [vmem:[%s4 + $0xa0] sm:$0xff] %v1268
  %1301 = vst [vmem:[%s4 + $0xa8] sm:$0xff] %v1269
  %1302 = vst [vmem:[%s4 + $0xb0] sm:$0xff] %v1270
  %1303 = vst [vmem:[%s4 + $0xb8] sm:$0xff] %v1271
  %1304 = vst [vmem:[%s4 + $0xc0] sm:$0xff] %v1272
  %1305 = vst [vmem:[%s4 + $0xc8] sm:$0xff] %v1273
  %1306 = vst [vmem:[%s4 + $0xd0] sm:$0xff] %v1274
  %1307 = vst [vmem:[%s4 + $0xd8] sm:$0xff] %v1275
  %1308 = vst [vmem:[%s4 + $0xe0] sm:$0xff] %v1276
  %1309 = vst [vmem:[%s4 + $0xe8] sm:$0xff] %v1277
  %1310 = vst [vmem:[%s4 + $0xf0] sm:$0xff] %v1278
  %1311 = vst [vmem:[%s4 + $0xf8] sm:$0xff] %v1279
  // Predicated region
  $region18: #{conv_bn_relu_3d.1} parent=0 // pred_check
    _
  $region19: #{conv_bn_relu_3d.1} parent=0 // pred_check_branch
    %1313 = sbr.rel (0) target = $region21
  $region20: #{conv_bn_relu_3d.1} parent=0 // pred_region
    _
  $region21: #{conv_bn_relu_3d.1} parent=0 // pred_fallthru
    _
  // Predicated region
  $region22: #{conv_bn_relu_3d.1} parent=0 // pred_check
    _
  $region23: #{conv_bn_relu_3d.1} parent=0 // pred_check_branch
    %1315 = sbr.rel (0) target = $region25
  $region24: #{conv_bn_relu_3d.1} parent=0 // pred_region
    _
  $region25: #{conv_bn_relu_3d.1} parent=0 // pred_fallthru
    _

</llo_original>
